<compile_context>
chip_gen: v7x
topology: tpu7x:2x2x1
jax: 0.10.0
libtpu: 0.0.40
codegen_flags: <defaults>
</compile_context>

<pallas_src>
import jax
import jax.numpy as jnp
from jax.experimental import pallas as pl
from jax.experimental.pallas import tpu as pltpu

LANE = 128
SUBLANE = 8


def _round_up(x, m):
    return (x + m - 1) // m * m


def dissent_kernel(uv_ref, w_lin_ref, w_p_ref, b_ref, out_ref):
    """One batch tile of the folded DisSent forward.

    out = [u, v] @ W_lin + (u * v) @ W_p + b      (all-affine classifier folded offline)
    """
    uv = uv_ref[...]                               # (tile_m, 4H) f32
    two_h = w_p_ref.shape[0]
    u = uv[:, :two_h]
    v = uv[:, two_h:]
    p = u * v                                      # f32 elementwise (VPU; v5e has no bf16 VPU)

    # bf16 operands, f32 accumulation on the MXU.
    acc = jnp.dot(uv.astype(jnp.bfloat16), w_lin_ref[...],
                  preferred_element_type=jnp.float32)
    acc = acc + jnp.dot(p.astype(jnp.bfloat16), w_p_ref[...],
                        preferred_element_type=jnp.float32)
    out_ref[...] = acc + b_ref[...]                # lane-dense (tile_m, 128k) store


def fold_classifier(params, two_h):
    """Fold the 3 bias-only Linears and the feature fusion into one affine map.

    Valid because nn.Sequential(Linear, Linear, Linear) has no activation and dpout_fc == 0.
    Returns (W_lin (4H, n), W_p (2H, n), b_eff (1, n)) in f32.
    """
    w1, b1, w2, b2, w3, b3 = params                # weights stored (in_features, out_features)
    w_eff = (w1 @ w2) @ w3                         # (5*2H, n_classes)
    b_eff = (b1 @ w2 + b2) @ w3 + b3               # (1, n_classes)

    ws = [w_eff[i * two_h:(i + 1) * two_h, :] for i in range(5)]   # slices for u,v,u-v,u*v,(u+v)/2
    w_u = ws[0] + ws[2] + 0.5 * ws[4]
    w_v = ws[1] - ws[2] + 0.5 * ws[4]
    w_lin = jnp.concatenate([w_u, w_v], axis=0)    # (4H, n_classes)
    w_p = ws[3]                                    # (2H, n_classes)
    return w_lin, w_p, b_eff


def dissent_forward(u, v, params):
    """u, v: (B, 2*enc_lstm_dim) f32 encoder outputs. Returns (B, n_classes) f32 logits."""
    B, two_h = u.shape
    four_h = 2 * two_h
    n_classes = params[5].shape[1]

    # Offline fold (plain XLA ops, negligible vs the per-step kernel at real sizes).
    w_lin, w_p, b_eff = fold_classifier(params, two_h)

    # Lane-dense class axis: pad to a multiple of 128 (zero columns sliced off afterwards).
    n_pad = max(LANE, _round_up(n_classes, LANE))
    w_lin_p = jnp.zeros((four_h, n_pad), jnp.bfloat16).at[:, :n_classes].set(
        w_lin.astype(jnp.bfloat16))
    w_p_p = jnp.zeros((two_h, n_pad), jnp.bfloat16).at[:, :n_classes].set(
        w_p.astype(jnp.bfloat16))
    b_p = jnp.zeros((1, n_pad), jnp.float32).at[:, :n_classes].set(b_eff)

    # Single lane-dense activation operand [u, v]; pad batch to the row tile.
    uv = jnp.concatenate([u, v], axis=1)           # (B, 4H)
    tile_m = 128 if B >= 128 else _round_up(B, SUBLANE)
    b_pad = _round_up(B, tile_m)
    if b_pad != B:
        uv = jnp.pad(uv, ((0, b_pad - B), (0, 0)))

    grid = (b_pad // tile_m,)

    flops = 2 * b_pad * (four_h + two_h) * n_pad + b_pad * two_h + b_pad * n_pad
    bytes_accessed = (b_pad * four_h * 4 + four_h * n_pad * 2 + two_h * n_pad * 2
                      + n_pad * 4 + b_pad * n_pad * 4)

    out = pl.pallas_call(
        dissent_kernel,
        out_shape=jax.ShapeDtypeStruct((b_pad, n_pad), jnp.float32),
        grid=grid,
        in_specs=[
            pl.BlockSpec((tile_m, four_h), lambda i: (i, 0)),   # activations: tiled over batch
            pl.BlockSpec((four_h, n_pad), lambda i: (0, 0)),    # folded weights: resident
            pl.BlockSpec((two_h, n_pad), lambda i: (0, 0)),
            pl.BlockSpec((1, n_pad), lambda i: (0, 0)),
        ],
        out_specs=pl.BlockSpec((tile_m, n_pad), lambda i: (i, 0)),
        compiler_params=pltpu.CompilerParams(
            dimension_semantics=("parallel",)),                 # v7x: split rows across 2 TCs
        cost_estimate=pl.CostEstimate(
            flops=int(flops), transcendentals=0, bytes_accessed=int(bytes_accessed)),
    )(uv, w_lin_p, w_p_p, b_p)

    return out[:B, :n_classes]


def init_linear(key, fan_in, fan_out):
    """PyTorch nn.Linear default init: U(-1/sqrt(fan_in), 1/sqrt(fan_in)); weight stored (in, out)."""
    kw, kb = jax.random.split(key)
    bound = 1.0 / jnp.sqrt(float(fan_in))
    w = jax.random.uniform(kw, (fan_in, fan_out), jnp.float32, -bound, bound)
    b = jax.random.uniform(kb, (1, fan_out), jnp.float32, -bound, bound)
    return w, b


def reference_forward(u, v, params):
    """Pure-JAX f32 reference matching the PyTorch module (dpout_fc == 0.0, eval mode)."""
    w1, b1, w2, b2, w3, b3 = params
    feats = jnp.concatenate([u, v, u - v, u * v, (u + v) / 2.0], axis=1)
    h1 = feats @ w1 + b1
    h2 = h1 @ w2 + b2
    return h2 @ w3 + b3


if __name__ == "__main__":
    # Small config consistent with the module: inputdim = 5 * 2 * enc_lstm_dim.
    enc_lstm_dim = 64                    # 2H = 128 -> lane-dense encoder features
    fc_dim = 128
    n_classes = 8
    batch = 8
    inputdim = 5 * 2 * enc_lstm_dim      # 640

    key = jax.random.PRNGKey(0)
    k_u, k_v, k1, k2, k3 = jax.random.split(key, 5)

    # "Encoder outputs" u, v (stand-ins for encoder(s1), encoder(s2)).
    u = jax.random.normal(k_u, (batch, 2 * enc_lstm_dim), jnp.float32)
    v = jax.random.normal(k_v, (batch, 2 * enc_lstm_dim), jnp.float32)

    # Classifier: Linear(640,128) -> Linear(128,128) -> Linear(128,8)   (dpout_fc == 0.0)
    # TODO(synk): dropout path (dpout_fc > 0) is training-only and not implemented.
    w1, b1 = init_linear(k1, inputdim, fc_dim)
    w2, b2 = init_linear(k2, fc_dim, fc_dim)
    w3, b3 = init_linear(k3, fc_dim, n_classes)
    params = (w1, b1, w2, b2, w3, b3)

    out = jax.block_until_ready(dissent_forward(u, v, params))
    ref = reference_forward(u, v, params)

    assert out.shape == (batch, n_classes)
    max_err = float(jnp.max(jnp.abs(out - ref)))
    # bf16 MXU operands (f32 accumulation) -> ~1% relative error vs the f32 reference.
    assert jnp.allclose(out, ref, rtol=2e-2, atol=1e-2), f"mismatch vs reference, max_abs_err={max_err}"

    print("KERNEL_OK")
</pallas_src>

<mosaic_0001>
module attributes {stable_mosaic.version = 11 : i64} {
  func.func @dissent_kernel(%arg0: i32, %arg1: memref<8x256xf32, #tpu.memory_space<vmem>>, %arg2: memref<256x128xbf16, #tpu.memory_space<vmem>>, %arg3: memref<128x128xbf16, #tpu.memory_space<vmem>>, %arg4: memref<1x128xf32, #tpu.memory_space<vmem>>, %arg5: memref<8x128xf32, #tpu.memory_space<vmem>>) attributes {dimension_semantics = [#tpu.dimension_semantics<parallel>], iteration_bounds = array<i64: 1>, scalar_prefetch = 0 : i64, scratch_operands = 0 : i64, tpu.core_type = #tpu.core_type<tc>, window_params = [{transform_indices = @transform_0, window_bounds = array<i64: 8, 256>}, {pipeline_mode = #tpu.pipeline_mode<synchronous>, transform_indices = @transform_1, window_bounds = array<i64: 256, 128>}, {pipeline_mode = #tpu.pipeline_mode<synchronous>, transform_indices = @transform_2, window_bounds = array<i64: 128, 128>}, {pipeline_mode = #tpu.pipeline_mode<synchronous>, transform_indices = @transform_3, window_bounds = array<i64: 1, 128>}, {transform_indices = @transform_4, window_bounds = array<i64: 8, 128>}]} {
    %c0 = arith.constant 0 : index
    %c0_0 = arith.constant 0 : index
    %0 = vector.load %arg1[%c0, %c0_0] : memref<8x256xf32, #tpu.memory_space<vmem>>, vector<8x256xf32>
    %1 = vector.extract_strided_slice %0 {offsets = [0, 0], sizes = [8, 128], strides = [1, 1]} : vector<8x256xf32> to vector<8x128xf32>
    %2 = vector.extract_strided_slice %0 {offsets = [0, 128], sizes = [8, 128], strides = [1, 1]} : vector<8x256xf32> to vector<8x128xf32>
    %3 = arith.mulf %1, %2 : vector<8x128xf32>
    %4 = arith.truncf %0 : vector<8x256xf32> to vector<8x256xbf16>
    %c0_1 = arith.constant 0 : index
    %c0_2 = arith.constant 0 : index
    %5 = vector.load %arg2[%c0_1, %c0_2] : memref<256x128xbf16, #tpu.memory_space<vmem>>, vector<256x128xbf16>
    %cst = arith.constant dense<0.000000e+00> : vector<8x128xf32>
    %6 = tpu.matmul %4, %5, %cst {dimension_numbers = #tpu.dot_dimension_numbers<[1], [0], [0], [1], [0, 0, 1, 1], [], []>} : vector<8x256xbf16>, vector<256x128xbf16>, vector<8x128xf32> -> vector<8x128xf32>
    %7 = arith.truncf %3 : vector<8x128xf32> to vector<8x128xbf16>
    %c0_3 = arith.constant 0 : index
    %c0_4 = arith.constant 0 : index
    %8 = vector.load %arg3[%c0_3, %c0_4] : memref<128x128xbf16, #tpu.memory_space<vmem>>, vector<128x128xbf16>
    %cst_5 = arith.constant dense<0.000000e+00> : vector<8x128xf32>
    %9 = tpu.matmul %7, %8, %cst_5 {dimension_numbers = #tpu.dot_dimension_numbers<[1], [0], [0], [1], [0, 0, 1, 1], [], []>} : vector<8x128xbf16>, vector<128x128xbf16>, vector<8x128xf32> -> vector<8x128xf32>
    %10 = arith.addf %6, %9 : vector<8x128xf32>
    %c0_6 = arith.constant 0 : index
    %c0_7 = arith.constant 0 : index
    %11 = vector.load %arg4[%c0_6, %c0_7] : memref<1x128xf32, #tpu.memory_space<vmem>>, vector<1x128xf32>
    %12 = vector.broadcast %11 : vector<1x128xf32> to vector<8x128xf32>
    %13 = arith.addf %10, %12 : vector<8x128xf32>
    %c0_8 = arith.constant 0 : index
    %c0_9 = arith.constant 0 : index
    %14 = vector.load %arg5[%c0_8, %c0_9] : memref<8x128xf32, #tpu.memory_space<vmem>>, vector<8x128xf32>
    tpu.vector_store %arg5[%c0_8, %c0_9], %13 {strides = array<i32>} : memref<8x128xf32, #tpu.memory_space<vmem>>, vector<8x128xf32>,
    return
  }
  func.func @transform_0(%arg0: i32) -> (i32, i32) {
    %c0_i32 = arith.constant 0 : i32
    %c0_i32_0 = arith.constant 0 : i32
    return %arg0, %c0_i32 : i32, i32
  }
  func.func @transform_1(%arg0: i32) -> (i32, i32) {
    %c0_i32 = arith.constant 0 : i32
    %c0_i32_0 = arith.constant 0 : i32
    %c0_i32_1 = arith.constant 0 : i32
    return %c0_i32, %c0_i32_0 : i32, i32
  }
  func.func @transform_2(%arg0: i32) -> (i32, i32) {
    %c0_i32 = arith.constant 0 : i32
    %c0_i32_0 = arith.constant 0 : i32
    %c0_i32_1 = arith.constant 0 : i32
    return %c0_i32, %c0_i32_0 : i32, i32
  }
  func.func @transform_3(%arg0: i32) -> (i32, i32) {
    %c0_i32 = arith.constant 0 : i32
    %c0_i32_0 = arith.constant 0 : i32
    %c0_i32_1 = arith.constant 0 : i32
    return %c0_i32, %c0_i32_0 : i32, i32
  }
  func.func @transform_4(%arg0: i32) -> (i32, i32) {
    %c0_i32 = arith.constant 0 : i32
    %c0_i32_0 = arith.constant 0 : i32
    return %arg0, %c0_i32 : i32, i32
  }
}

</mosaic_0001>

<llo_original>
// kernel: tpu_custom_call.1
$region0: #{tpu_custom_call.1}
  #allocation0 [shape = 'u32[]', space=smem, size = 0x4, offset = 0x4, fixed_abs, tag = 'smem constant byte address 0x4 - core index']
  #allocation1 [shape = 'u32[144,128]{1,0:T(1,128)}', space=vmem, size = 0x12000, scoped, tag = 'internal scratch']
  %s0 = inlined_call_operand.hbm [shape: f32[8,256], index: 0, kind: input, shape index: {}]
  %s1 = inlined_call_operand.hbm [shape: bf16[256,128], index: 1, kind: input, shape index: {}]
  %s2 = inlined_call_operand.hbm [shape: bf16[128,128], index: 2, kind: input, shape index: {}]
  %s3 = inlined_call_operand.vmem [shape: f32[1,128], index: 3, kind: input, shape index: {}]
  %s4 = inlined_call_operand.hbm [shape: f32[8,128], index: 4, kind: output, shape index: {}]
  %s5 = sld [smem:[#allocation0]]
  $region38: #{tpu_custom_call.1} parent=0
    _
  %s7 = ssub.s32 1, %s5
  %s8 = scalar_select 0, %s7, %s5
  $region1: #{tpu_custom_call.1} parent=0
    #allocation2 [shape = 'u8[8192]{0}', space=vmem, size = 0x2000, scoped, tag = 'input window, operand 0, single buffered']
    #allocation3 [shape = 's32[1]{0}', space=sflag, size = 0x4, scoped, tag = 'scoped memory for tpu_custom_call.1']
    #allocation4 [shape = 's32[1]{0}', space=sflag, size = 0x4, scoped, tag = 'scoped memory for tpu_custom_call.1']
    #allocation5 [shape = 'u8[65536]{0}', space=vmem, size = 0x10000, scoped, tag = 'input window, operand 1, single buffered']
    #allocation6 [shape = 's32[1]{0}', space=sflag, size = 0x4, scoped, tag = 'scoped memory for tpu_custom_call.1']
    #allocation7 [shape = 'u8[32768]{0}', space=vmem, size = 0x8000, scoped, tag = 'input window, operand 2, single buffered']
    #allocation8 [shape = 'u8[4096]{0}', space=vmem, size = 0x1000, scoped, tag = 'output window, operand 0, single buffered']
    %9 = vsyncpa [#allocation3], 0
    %10 = vsyncpa [#allocation6], 0
    %11 = vsyncpa [#allocation4], 0
    // Predicated region
    $region2: #{tpu_custom_call.1} parent=1 // pred_check
      _
    $region3: #{tpu_custom_call.1} parent=1 // pred_check_branch
      %13 = sbr.rel (0) target = $region5
    $region4: #{tpu_custom_call.1} parent=1 // pred_region
      %s15 = ssub.s32 256, 256
      %16 = vsyncadd [#allocation3], %s15
      %s18 = sshll.u32 [#allocation2], 4
      %s19 = int_to_ptr.vmem [resolvable:$true] %s18
      %21 = dma.hbm_to_vmem [thread:$0]  %s0, 256, %s19, [#allocation3]
    $region5: #{tpu_custom_call.1} parent=1 // pred_fallthru
      _
    // Predicated region
    $region6: #{tpu_custom_call.1} parent=1 // pred_check
      _
    $region7: #{tpu_custom_call.1} parent=1 // pred_check_branch
      %23 = sbr.rel (0) target = $region9
    $region8: #{tpu_custom_call.1} parent=1 // pred_region
      %s25 = ssub.s32 2048, 2048
      %26 = vsyncadd [#allocation6], %s25
      %s27 = sshll.u32 [#allocation5], 4
      %s28 = int_to_ptr.vmem [resolvable:$true] %s27
      %33 = dma.hbm_to_vmem [thread:$0]  %s1, 2048, %s28, [#allocation6], 64, 64, 4
    $region9: #{tpu_custom_call.1} parent=1 // pred_fallthru
      _
    // Predicated region
    $region10: #{tpu_custom_call.1} parent=1 // pred_check
      _
    $region11: #{tpu_custom_call.1} parent=1 // pred_check_branch
      %35 = sbr.rel (0) target = $region13
    $region12: #{tpu_custom_call.1} parent=1 // pred_region
      %s37 = ssub.s32 1024, 1024
      %38 = vsyncadd [#allocation6], %s37
      %s39 = sshll.u32 [#allocation7], 4
      %s40 = int_to_ptr.vmem [resolvable:$true] %s39
      %45 = dma.hbm_to_vmem [thread:$0]  %s2, 1024, %s40, [#allocation6], 64, 64, 4
    $region13: #{tpu_custom_call.1} parent=1 // pred_fallthru
      _
    // Predicated region
    $region14: #{tpu_custom_call.1} parent=1 // pred_check
      _
    $region15: #{tpu_custom_call.1} parent=1 // pred_check_branch
      %47 = sbr.rel (0) target = $region17
    $region16: #{tpu_custom_call.1} parent=1 // pred_region
      _
    $region17: #{tpu_custom_call.1} parent=1 // pred_fallthru
      _
    // Predicated region
    $region18: #{tpu_custom_call.1} parent=1 // pred_check
      _
    $region19: #{tpu_custom_call.1} parent=1 // pred_check_branch
      %49 = sbr.rel (0) target = $region21
    $region20: #{tpu_custom_call.1} parent=1 // pred_region
      %50 = dma.done [#allocation3], 256
    $region21: #{tpu_custom_call.1} parent=1 // pred_fallthru
      _
    // Predicated region
    $region22: #{tpu_custom_call.1} parent=1 // pred_check
      _
    $region23: #{tpu_custom_call.1} parent=1 // pred_check_branch
      %52 = sbr.rel (0) target = $region25
    $region24: #{tpu_custom_call.1} parent=1 // pred_region
      %53 = dma.done [#allocation6], 2048
    $region25: #{tpu_custom_call.1} parent=1 // pred_fallthru
      _
    // Predicated region
    $region26: #{tpu_custom_call.1} parent=1 // pred_check
      _
    $region27: #{tpu_custom_call.1} parent=1 // pred_check_branch
      %55 = sbr.rel (0) target = $region29
    $region28: #{tpu_custom_call.1} parent=1 // pred_region
      %56 = dma.done [#allocation6], 1024
    $region29: #{tpu_custom_call.1} parent=1 // pred_fallthru
      _
    %v58 = vld [vmem:[#allocation2] sm:$0xff]
    %v59 = vld [vmem:[#allocation2 + $0x8] sm:$0xff]
    %v60 = vmul.f32 %v58, %v59
    %v61 = vpack.c.bf16 %v58, %v58
    %v62 = vpack.c.bf16 %v59, %v59
    %v63 = vld [vmem:[#allocation5] sm:$0xf]
    %v64 = vld [vmem:[#allocation5 + $0x4] sm:$0xf]
    %v65 = vld [vmem:[#allocation5 + $0x8] sm:$0xf]
    %v66 = vld [vmem:[#allocation5 + $0xc] sm:$0xf]
    %v67 = vld [vmem:[#allocation5 + $0x10] sm:$0xf]
    %v68 = vld [vmem:[#allocation5 + $0x14] sm:$0xf]
    %v69 = vld [vmem:[#allocation5 + $0x18] sm:$0xf]
    %v70 = vld [vmem:[#allocation5 + $0x1c] sm:$0xf]
    %v71 = vld [vmem:[#allocation5 + $0x20] sm:$0xf]
    %v72 = vld [vmem:[#allocation5 + $0x24] sm:$0xf]
    %v73 = vld [vmem:[#allocation5 + $0x28] sm:$0xf]
    %v74 = vld [vmem:[#allocation5 + $0x2c] sm:$0xf]
    %v75 = vld [vmem:[#allocation5 + $0x30] sm:$0xf]
    %v76 = vld [vmem:[#allocation5 + $0x34] sm:$0xf]
    %v77 = vld [vmem:[#allocation5 + $0x38] sm:$0xf]
    %v78 = vld [vmem:[#allocation5 + $0x3c] sm:$0xf]
    %v79 = vld [vmem:[#allocation5 + $0x40] sm:$0xf]
    %v80 = vld [vmem:[#allocation5 + $0x44] sm:$0xf]
    %v81 = vld [vmem:[#allocation5 + $0x48] sm:$0xf]
    %v82 = vld [vmem:[#allocation5 + $0x4c] sm:$0xf]
    %v83 = vld [vmem:[#allocation5 + $0x50] sm:$0xf]
    %v84 = vld [vmem:[#allocation5 + $0x54] sm:$0xf]
    %v85 = vld [vmem:[#allocation5 + $0x58] sm:$0xf]
    %v86 = vld [vmem:[#allocation5 + $0x5c] sm:$0xf]
    %v87 = vld [vmem:[#allocation5 + $0x60] sm:$0xf]
    %v88 = vld [vmem:[#allocation5 + $0x64] sm:$0xf]
    %v89 = vld [vmem:[#allocation5 + $0x68] sm:$0xf]
    %v90 = vld [vmem:[#allocation5 + $0x6c] sm:$0xf]
    %v91 = vld [vmem:[#allocation5 + $0x70] sm:$0xf]
    %v92 = vld [vmem:[#allocation5 + $0x74] sm:$0xf]
    %v93 = vld [vmem:[#allocation5 + $0x78] sm:$0xf]
    %v94 = vld [vmem:[#allocation5 + $0x7c] sm:$0xf]
    %v95 = vpack.c.bf16 %v60, %v60
    %v96 = vld [vmem:[#allocation7] sm:$0xf]
    %v97 = vld [vmem:[#allocation7 + $0x4] sm:$0xf]
    %v98 = vld [vmem:[#allocation7 + $0x8] sm:$0xf]
    %v99 = vld [vmem:[#allocation7 + $0xc] sm:$0xf]
    %v100 = vld [vmem:[#allocation7 + $0x10] sm:$0xf]
    %v101 = vld [vmem:[#allocation7 + $0x14] sm:$0xf]
    %v102 = vld [vmem:[#allocation7 + $0x18] sm:$0xf]
    %v103 = vld [vmem:[#allocation7 + $0x1c] sm:$0xf]
    %v104 = vld [vmem:[#allocation7 + $0x20] sm:$0xf]
    %v105 = vld [vmem:[#allocation7 + $0x24] sm:$0xf]
    %v106 = vld [vmem:[#allocation7 + $0x28] sm:$0xf]
    %v107 = vld [vmem:[#allocation7 + $0x2c] sm:$0xf]
    %v108 = vld [vmem:[#allocation7 + $0x30] sm:$0xf]
    %v109 = vld [vmem:[#allocation7 + $0x34] sm:$0xf]
    %v110 = vld [vmem:[#allocation7 + $0x38] sm:$0xf]
    %v111 = vld [vmem:[#allocation7 + $0x3c] sm:$0xf]
    %v128 = vunpack.c.l.b16 %v96
    %v129 = vunpack.c.l.b16 %v97
    %v130 = vunpack.c.l.b16 %v98
    %v131 = vunpack.c.l.b16 %v99
    %v132 = vunpack.c.l.b16 %v100
    %v133 = vunpack.c.l.b16 %v101
    %v134 = vunpack.c.l.b16 %v102
    %v135 = vunpack.c.l.b16 %v103
    %v136 = vunpack.c.l.b16 %v104
    %v137 = vunpack.c.l.b16 %v105
    %v138 = vunpack.c.l.b16 %v106
    %v139 = vunpack.c.l.b16 %v107
    %v140 = vunpack.c.l.b16 %v108
    %v141 = vunpack.c.l.b16 %v109
    %v142 = vunpack.c.l.b16 %v110
    %v143 = vunpack.c.l.b16 %v111
    %v144 = vpack.c.b16 %v129, %v128
    %v145 = vpack.c.b16 %v131, %v130
    %v146 = vpack.c.b16 %v133, %v132
    %v147 = vpack.c.b16 %v135, %v134
    %v148 = vpack.c.b16 %v137, %v136
    %v149 = vpack.c.b16 %v139, %v138
    %v150 = vpack.c.b16 %v141, %v140
    %v151 = vpack.c.b16 %v143, %v142
    %160 = vmatprep.subr.bf16.mxu0 0
    %161 = vmatpush1.bf16.msra.mxu0 %v144
    %162 = vmatprep.subr.bf16.mxu0 0
    %163 = vmatpush1.bf16.msra.mxu0 %v145
    %164 = vmatprep.subr.bf16.mxu0 0
    %165 = vmatpush1.bf16.msra.mxu0 %v146
    %166 = vmatprep.subr.bf16.mxu0 0
    %167 = vmatpush1.bf16.msra.mxu0 %v147
    %168 = vmatprep.subr.bf16.mxu0 0
    %169 = vmatpush1.bf16.msra.mxu0 %v148
    %170 = vmatprep.subr.bf16.mxu0 0
    %171 = vmatpush1.bf16.msra.mxu0 %v149
    %172 = vmatprep.subr.bf16.mxu0 0
    %173 = vmatpush1.bf16.msra.mxu0 %v150
    %174 = vmatprep.subr.bf16.mxu0 0
    %175 = vmatpush1.bf16.msra.mxu0 %v151
    %176 = vmatprep.subr.bf16.mxu0 0
    %177 = vmatpush1.bf16.msra.mxu0 0
    %178 = vmatprep.subr.bf16.mxu0 0
    %179 = vmatpush1.bf16.msra.mxu0 0
    %180 = vmatprep.subr.bf16.mxu0 0
    %181 = vmatpush1.bf16.msra.mxu0 0
    %182 = vmatprep.subr.bf16.mxu0 0
    %183 = vmatpush1.bf16.msra.mxu0 0
    %184 = vmatprep.subr.bf16.mxu0 0
    %185 = vmatpush1.bf16.msra.mxu0 0
    %186 = vmatprep.subr.bf16.mxu0 0
    %187 = vmatpush1.bf16.msra.mxu0 0
    %188 = vmatprep.subr.bf16.mxu0 0
    %189 = vmatpush1.bf16.msra.mxu0 0
    %190 = vmatprep.subr.bf16.mxu0 0
    %191 = vmatpush1.bf16.msra.mxu0 0
    %192 = vmatprep.mubr.bf16.mxu0 0
    %193 = vmatmul.mubr.bf16.gmra.mrb[0].mxu0 %v95
    %v194 = vpop.f32.mrb[0].mxu0
    %v195 = vadd.f32 0.0, %v194
    %v196 = vpop.f32.mrb[0].mxu0
    %v197 = vpop.f32.mrb[0].mxu0
    %v198 = vpop.f32.mrb[0].mxu0
    %199 = vdwg.mxu0
    %v232 = vunpack.c.l.b16 %v63
    %v233 = vunpack.c.l.b16 %v64
    %v234 = vunpack.c.l.b16 %v65
    %v235 = vunpack.c.l.b16 %v66
    %v236 = vunpack.c.l.b16 %v67
    %v237 = vunpack.c.l.b16 %v68
    %v238 = vunpack.c.l.b16 %v69
    %v239 = vunpack.c.l.b16 %v70
    %v240 = vunpack.c.l.b16 %v71
    %v241 = vunpack.c.l.b16 %v72
    %v242 = vunpack.c.l.b16 %v73
    %v243 = vunpack.c.l.b16 %v74
    %v244 = vunpack.c.l.b16 %v75
    %v245 = vunpack.c.l.b16 %v76
    %v246 = vunpack.c.l.b16 %v77
    %v247 = vunpack.c.l.b16 %v78
    %v248 = vunpack.c.l.b16 %v79
    %v249 = vunpack.c.l.b16 %v80
    %v250 = vunpack.c.l.b16 %v81
    %v251 = vunpack.c.l.b16 %v82
    %v252 = vunpack.c.l.b16 %v83
    %v253 = vunpack.c.l.b16 %v84
    %v254 = vunpack.c.l.b16 %v85
    %v255 = vunpack.c.l.b16 %v86
    %v256 = vunpack.c.l.b16 %v87
    %v257 = vunpack.c.l.b16 %v88
    %v258 = vunpack.c.l.b16 %v89
    %v259 = vunpack.c.l.b16 %v90
    %v260 = vunpack.c.l.b16 %v91
    %v261 = vunpack.c.l.b16 %v92
    %v262 = vunpack.c.l.b16 %v93
    %v263 = vunpack.c.l.b16 %v94
    %v264 = vpack.c.b16 %v233, %v232
    %v265 = vpack.c.b16 %v235, %v234
    %v266 = vpack.c.b16 %v237, %v236
    %v267 = vpack.c.b16 %v239, %v238
    %v268 = vpack.c.b16 %v241, %v240
    %v269 = vpack.c.b16 %v243, %v242
    %v270 = vpack.c.b16 %v245, %v244
    %v271 = vpack.c.b16 %v247, %v246
    %v272 = vpack.c.b16 %v249, %v248
    %v273 = vpack.c.b16 %v251, %v250
    %v274 = vpack.c.b16 %v253, %v252
    %v275 = vpack.c.b16 %v255, %v254
    %v276 = vpack.c.b16 %v257, %v256
    %v277 = vpack.c.b16 %v259, %v258
    %v278 = vpack.c.b16 %v261, %v260
    %v279 = vpack.c.b16 %v263, %v262
    %296 = vmatprep.subr.bf16.mxu0 0
    %297 = vmatpush1.bf16.msra.mxu0 %v264
    %298 = vmatprep.subr.bf16.mxu0 0
    %299 = vmatpush1.bf16.msra.mxu0 %v265
    %300 = vmatprep.subr.bf16.mxu0 0
    %301 = vmatpush1.bf16.msra.mxu0 %v266
    %302 = vmatprep.subr.bf16.mxu0 0
    %303 = vmatpush1.bf16.msra.mxu0 %v267
    %304 = vmatprep.subr.bf16.mxu0 0
    %305 = vmatpush1.bf16.msra.mxu0 %v268
    %306 = vmatprep.subr.bf16.mxu0 0
    %307 = vmatpush1.bf16.msra.mxu0 %v269
    %308 = vmatprep.subr.bf16.mxu0 0
    %309 = vmatpush1.bf16.msra.mxu0 %v270
    %310 = vmatprep.subr.bf16.mxu0 0
    %311 = vmatpush1.bf16.msra.mxu0 %v271
    %312 = vmatprep.subr.bf16.mxu0 0
    %313 = vmatpush1.bf16.msra.mxu0 %v272
    %314 = vmatprep.subr.bf16.mxu0 0
    %315 = vmatpush1.bf16.msra.mxu0 %v273
    %316 = vmatprep.subr.bf16.mxu0 0
    %317 = vmatpush1.bf16.msra.mxu0 %v274
    %318 = vmatprep.subr.bf16.mxu0 0
    %319 = vmatpush1.bf16.msra.mxu0 %v275
    %320 = vmatprep.subr.bf16.mxu0 0
    %321 = vmatpush1.bf16.msra.mxu0 %v276
    %322 = vmatprep.subr.bf16.mxu0 0
    %323 = vmatpush1.bf16.msra.mxu0 %v277
    %324 = vmatprep.subr.bf16.mxu0 0
    %325 = vmatpush1.bf16.msra.mxu0 %v278
    %326 = vmatprep.subr.bf16.mxu0 0
    %327 = vmatpush1.bf16.msra.mxu0 %v279
    %328 = vmatprep.mubr.bf16.mxu0 %v62
    %329 = vmatmul.mubr.bf16.gmra.mrb[0].mxu0 %v61
    %v330 = vpop.f32.mrb[0].mxu0
    %v331 = vadd.f32 %v195, %v330
    %v332 = vpop.f32.mrb[0].mxu0
    %v333 = vpop.f32.mrb[0].mxu0
    %v334 = vpop.f32.mrb[0].mxu0
    %335 = vdwg.mxu0
    %v336 = vld [vmem:[%s3] sm:$0x1]
    %v338 = vlaneseq
    %v339 = vshrl.u32 %v338, 7
    %v340 = vsub.s32 0, %v339
    %v341 = vrot.slane %v336, %v340
    %v343 = vadd.f32 %v331, %v341
    %344 = vst [vmem:[#allocation8] sm:$0xff] %v343
    // Predicated region
    $region30: #{tpu_custom_call.1} parent=1 // pred_check
      _
    $region31: #{tpu_custom_call.1} parent=1 // pred_check_branch
      %346 = sbr.rel (0) target = $region33
    $region32: #{tpu_custom_call.1} parent=1 // pred_region
      %s348 = ssub.s32 128, 128
      %349 = vsyncadd [#allocation4], %s348
      %s351 = sshll.u32 [#allocation8], 4
      %s352 = int_to_ptr.vmem [resolvable:$true] %s351
      %354 = dma.vmem_to_hbm [thread:$0]  %s352, 128, %s4, [#allocation4]
    $region33: #{tpu_custom_call.1} parent=1 // pred_fallthru
      _
    // Predicated region
    $region34: #{tpu_custom_call.1} parent=1 // pred_check
      _
    $region35: #{tpu_custom_call.1} parent=1 // pred_check_branch
      %356 = sbr.rel (0) target = $region37
    $region36: #{tpu_custom_call.1} parent=1 // pred_region
      %357 = dma.done [#allocation4], 128
    $region37: #{tpu_custom_call.1} parent=1 // pred_fallthru
      _
    %358 = vsyncpa [#allocation3], 1
    %359 = vsyncpa [#allocation6], 1
    %360 = vsyncpa [#allocation4], 1

</llo_original>
